<compile_context>
chip_gen: v7x
topology: tpu7x:2x2x1
jax: 0.10.0
libtpu: 0.0.40
codegen_flags: <defaults>
</compile_context>

<pallas_src>
import functools

import numpy as np
import jax
import jax.numpy as jnp
from jax import lax
from jax.experimental import pallas as pl
from jax.experimental.pallas import tpu as pltpu

KH = KW = 3  # conv kernel size (padding=1, stride=1 -> "same" conv)


def _round_up8(n):
    return -(-n // 8) * 8


# --------------------------------------------------------------------------- init-time packing
def prepare_params(params):
    """One-time parameter re-layout + packing (hoisted out of the per-call path).

    All weights are pre-transposed to [out_features, in_features] and packed, together
    with their biases (stored as an extra lane column), into ONE sublane-aligned f32
    slab -> one VMEM DMA instead of ten.  The fusion scalars go into ONE SMEM f32[2].

    Slab layout (row ranges are 8-sublane aligned):
        rows [r_conv, r_conv+Cmid) : [ conv_w.reshape(27, Cmid).T | conv_b ]
        rows [r_fc,   r_fc + C   ) : [ fc_w.T                     | fc_b   ]
        rows [r_w1,   r_w1 + HID ) : [ w1.T                       | b1     ]
        rows [r_w2,   r_w2 + C   ) : [ w2.T                       | b2     ]
    """
    conv_w = jnp.asarray(params["conv_w"], jnp.float32)        # [KH, KW, Cin, Cmid]
    kh, kw, Cin, Cmid = conv_w.shape
    assert (kh, kw) == (KH, KW)
    fc_w = jnp.asarray(params["fc_w"], jnp.float32)            # [Cmid, C]
    C = fc_w.shape[1]
    w1 = jnp.asarray(params["w1"], jnp.float32)                # [Dm, HID]
    Dm, HID = w1.shape
    w2 = jnp.asarray(params["w2"], jnp.float32)                # [HID, C]

    K = KH * KW * Cin                                          # 27

    r_conv = 0
    r_fc = r_conv + _round_up8(Cmid)
    r_w1 = r_fc + _round_up8(C)
    r_w2 = r_w1 + _round_up8(HID)
    rows = r_w2 + _round_up8(C)
    lanes = 128                                                # single lane-tile
    assert max(K, Cmid, Dm, HID) + 1 <= lanes

    slab = jnp.zeros((rows, lanes), jnp.float32)
    slab = slab.at[r_conv:r_conv + Cmid, 0:K].set(conv_w.reshape(K, Cmid).T)
    slab = slab.at[r_conv:r_conv + Cmid, K:K + 1].set(
        jnp.asarray(params["conv_b"], jnp.float32).reshape(-1, 1))
    slab = slab.at[r_fc:r_fc + C, 0:Cmid].set(fc_w.T)
    slab = slab.at[r_fc:r_fc + C, Cmid:Cmid + 1].set(
        jnp.asarray(params["fc_b"], jnp.float32).reshape(-1, 1))
    slab = slab.at[r_w1:r_w1 + HID, 0:Dm].set(w1.T)
    slab = slab.at[r_w1:r_w1 + HID, Dm:Dm + 1].set(
        jnp.asarray(params["b1"], jnp.float32).reshape(-1, 1))
    slab = slab.at[r_w2:r_w2 + C, 0:HID].set(w2.T)
    slab = slab.at[r_w2:r_w2 + C, HID:HID + 1].set(
        jnp.asarray(params["b2"], jnp.float32).reshape(-1, 1))

    wvm = jnp.stack([jnp.asarray(params["w_vis"], jnp.float32),
                     jnp.asarray(params["w_meta"], jnp.float32)])   # f32[2] -> SMEM

    layout = dict(K=K, Cin=Cin, Cmid=Cmid, C=C, Dm=Dm, HID=HID,
                  r_conv=r_conv, r_fc=r_fc, r_w1=r_w1, r_w2=r_w2)
    return {"slab": slab, "wvm": wvm, "layout": layout}


# --------------------------------------------------------------------------- kernel
def _make_fused_kernel(layout):
    K, Cmid, C, Dm, HID = (layout["K"], layout["Cmid"], layout["C"],
                           layout["Dm"], layout["HID"])
    r_conv, r_fc, r_w1, r_w2 = (layout["r_conv"], layout["r_fc"],
                                layout["r_w1"], layout["r_w2"])

    def kernel(patches_ref, meta_ref, pool_ref, params_ref, wvm_ref, o_ref):
        """Single fused forward pass of CombinedModel.

        patches_ref : [K=27, B*H*W]   im2col slab (long dim on lanes)
        meta_ref    : [Dm, B]         metadata (transposed)
        pool_ref    : [B*H*W, B]      block-diagonal pooling matrix (entries 1/HW)
        params_ref  : [rows, 128]     packed weight slab (see prepare_params)
        wvm_ref     : SMEM f32[2]     (w_vis, w_meta)
        o_ref       : [C, B]          transposed sigmoid output (wrapper transposes the 2x2 back)
        """
        # ---- zero-cost static views into the packed parameter slab
        cw  = params_ref[r_conv:r_conv + Cmid, 0:K]            # [Cmid, 27]
        cb  = params_ref[r_conv:r_conv + Cmid, K:K + 1]        # [Cmid, 1]
        fcw = params_ref[r_fc:r_fc + C, 0:Cmid]                # [C, Cmid]
        fcb = params_ref[r_fc:r_fc + C, Cmid:Cmid + 1]         # [C, 1]
        w1  = params_ref[r_w1:r_w1 + HID, 0:Dm]                # [HID, Dm]
        b1  = params_ref[r_w1:r_w1 + HID, Dm:Dm + 1]           # [HID, 1]
        w2  = params_ref[r_w2:r_w2 + C, 0:HID]                 # [C, HID]
        b2  = params_ref[r_w2:r_w2 + C, HID:HID + 1]           # [C, 1]

        # ---- vision branch: 3x3 same-conv as ONE K=27 matmul -> bias -> ReLU (lane-dense)
        acc = jnp.dot(cw, patches_ref[...],
                      preferred_element_type=jnp.float32)      # [Cmid, B*H*W]
        acc = jnp.maximum(acc + cb, 0.0)

        # Global average pool as ONE MXU matmul against the block-diagonal pooling matrix
        # (replaces per-batch XLU lane reductions + width-1 concat; layout-robust in H, W).
        pooled = jnp.dot(acc, pool_ref[...],
                         preferred_element_type=jnp.float32)   # [Cmid, B]

        lv = jnp.dot(fcw, pooled,
                     preferred_element_type=jnp.float32) + fcb  # [C, B]

        # ---- metadata branch: linear -> ReLU -> linear (same transposed orientation)
        h = jnp.maximum(
            jnp.dot(w1, meta_ref[...], preferred_element_type=jnp.float32) + b1, 0.0)
        lm = jnp.dot(w2, h, preferred_element_type=jnp.float32) + b2           # [C, B]

        # ---- fusion: sigmoid(w_vis * logits_vis + w_meta * logits_meta)
        o_ref[...] = jax.nn.sigmoid(wvm_ref[0] * lv + wvm_ref[1] * lm)

    return kernel


# --------------------------------------------------------------------------- wrapper
def combined_model_forward(image, metadata, slab, wvm, *, layout):
    """Per-call path: only data-dependent layout plumbing remains in the wrapper."""
    Cin, C = layout["Cin"], layout["C"]

    # Mirror the permute logic of CombinedModel.forward; internal compute is NHWC.
    # NOTE: like the PyTorch original, `shape[-1] == 3` is an NHWC-vs-NCHW heuristic
    # and misclassifies genuine NCHW inputs whose width happens to be 3.
    if image.ndim == 4 and image.shape[-1] == 3:
        x_nhwc = image                                  # already NHWC
    else:
        x_nhwc = jnp.transpose(image, (0, 2, 3, 1))     # NCHW -> NHWC
    x_nhwc = x_nhwc.astype(jnp.float32)
    B, H, W, Cin_img = x_nhwc.shape
    assert Cin_img == Cin
    HW = H * W

    # im2col built tap/channel-major: transpose the (tiny) padded image once, slice the
    # 9 taps, concat along axis 0 -> [27, B*H*W] produced directly with B*H*W on lanes.
    # No per-call transpose of the largest intermediate.
    xp = jnp.pad(x_nhwc, ((0, 0), (1, 1), (1, 1), (0, 0)))     # [B, H+2, W+2, Cin]
    xc = jnp.transpose(xp, (3, 0, 1, 2))                       # [Cin, B, H+2, W+2] (~6 KiB)
    taps = [xc[:, :, kh:kh + H, kw:kw + W].reshape(Cin, B * HW)
            for kh in range(KH) for kw in range(KW)]
    patches_t = jnp.concatenate(taps, axis=0)                  # [KH*KW*Cin, B*H*W]

    meta_t = metadata.astype(jnp.float32).T                    # [Dm, B] (tiny)

    # Block-diagonal pooling matrix, built with numpy at trace time -> baked XLA constant,
    # zero per-call wrapper ops, one tiny (~4 KiB) DMA.
    pool_mat = np.zeros((B * HW, B), np.float32)
    for b in range(B):
        pool_mat[b * HW:(b + 1) * HW, b] = 1.0 / HW

    vmem = pl.BlockSpec(memory_space=pltpu.MemorySpace.VMEM)
    smem = pl.BlockSpec(memory_space=pltpu.MemorySpace.SMEM)

    out_t = pl.pallas_call(
        _make_fused_kernel(layout),
        out_shape=jax.ShapeDtypeStruct((C, B), jnp.float32),
        in_specs=[vmem, vmem, vmem, vmem, smem],
        out_specs=vmem,
    )(patches_t, meta_t, pool_mat, slab, wvm)

    # Deliberately kept in the wrapper: an in-kernel [C,B]->[B,C] transpose at this
    # non-native 2x2 tile shape risks an unsupported Mosaic relayout; the XLA op on a
    # 2x2 is negligible.
    return out_t.T                                             # [B, C]


# --------------------------------------------------------------------------- reference
def reference_forward(image, metadata, p):
    if image.ndim == 4 and image.shape[-1] == 3:
        x = image
    else:
        x = jnp.transpose(image, (0, 2, 3, 1))
    x = x.astype(jnp.float32)
    y = lax.conv_general_dilated(
        x, p["conv_w"], window_strides=(1, 1), padding="SAME",
        dimension_numbers=("NHWC", "HWIO", "NHWC"),
        precision=lax.Precision.HIGHEST)
    y = jnp.maximum(y + p["conv_b"], 0.0)
    pooled = jnp.mean(y, axis=(1, 2))
    lv = jnp.dot(pooled, p["fc_w"], precision=lax.Precision.HIGHEST) + p["fc_b"]
    h = jnp.maximum(
        jnp.dot(metadata.astype(jnp.float32), p["w1"],
                precision=lax.Precision.HIGHEST) + p["b1"], 0.0)
    lm = jnp.dot(h, p["w2"], precision=lax.Precision.HIGHEST) + p["b2"]
    return jax.nn.sigmoid(p["w_vis"] * lv + p["w_meta"] * lm)


# --------------------------------------------------------------------------- main
if __name__ == "__main__":
    B, H, W, CIN = 2, 16, 16, 3        # image: NHWC (PyTorch forward permutes NHWC->NCHW)
    CMID = 8                           # conv output channels of the synthetic vision net
    D_META, HID = 8, 32                # metadata dim / MLP hidden dim
    NUM_CLASSES = 2

    key = jax.random.PRNGKey(0)
    k = jax.random.split(key, 10)

    params = {
        # vision branch
        "conv_w": 0.1 * jax.random.normal(k[0], (KH, KW, CIN, CMID), jnp.float32),
        "conv_b": 0.1 * jax.random.normal(k[1], (CMID,), jnp.float32),
        "fc_w":   0.1 * jax.random.normal(k[2], (CMID, NUM_CLASSES), jnp.float32),
        "fc_b":   0.1 * jax.random.normal(k[3], (NUM_CLASSES,), jnp.float32),
        # metadata branch
        "w1": 0.1 * jax.random.normal(k[4], (D_META, HID), jnp.float32),
        "b1": 0.1 * jax.random.normal(k[5], (HID,), jnp.float32),
        "w2": 0.1 * jax.random.normal(k[6], (HID, NUM_CLASSES), jnp.float32),
        "b2": 0.1 * jax.random.normal(k[7], (NUM_CLASSES,), jnp.float32),
        # fusion weights (nn.Parameter(torch.tensor(1.0)))
        "w_vis":  jnp.array(1.0, jnp.float32),
        "w_meta": jnp.array(1.0, jnp.float32),
    }

    image = jax.random.normal(k[8], (B, H, W, CIN), jnp.float32)      # NHWC input
    metadata = jax.random.normal(k[9], (B, D_META), jnp.float32)

    prepared = prepare_params(params)    # one-time packing / re-layout (init-time cost)
    fwd = jax.jit(functools.partial(combined_model_forward, layout=prepared["layout"]))
    out = jax.block_until_ready(fwd(image, metadata, prepared["slab"], prepared["wvm"]))

    ref = reference_forward(image, metadata, params)
    assert out.shape == (B, NUM_CLASSES), out.shape
    err = float(jnp.max(jnp.abs(out - ref)))
    assert err < 1e-4, err

    print("KERNEL_OK")
</pallas_src>

<mosaic_0001>
module attributes {stable_mosaic.version = 11 : i64} {
  func.func @kernel(%arg0: memref<27x512xf32, #tpu.memory_space<vmem>>, %arg1: memref<8x2xf32, #tpu.memory_space<vmem>>, %arg2: memref<512x2xf32, #tpu.memory_space<vmem>>, %arg3: memref<56x128xf32, #tpu.memory_space<vmem>>, %arg4: memref<2xf32, #tpu.memory_space<smem>>, %arg5: memref<2x2xf32, #tpu.memory_space<vmem>>) attributes {dimension_semantics = [], scalar_prefetch = 0 : i64, scratch_operands = 0 : i64, tpu.core_type = #tpu.core_type<tc>} {
    %c0 = arith.constant 0 : index
    %c0_0 = arith.constant 0 : index
    %0 = vector.load %arg3[%c0, %c0_0] : memref<56x128xf32, #tpu.memory_space<vmem>>, vector<8x27xf32>
    %c0_1 = arith.constant 0 : index
    %c27 = arith.constant 27 : index
    %1 = vector.load %arg3[%c0_1, %c27] : memref<56x128xf32, #tpu.memory_space<vmem>>, vector<8x1xf32>
    %c8 = arith.constant 8 : index
    %c0_2 = arith.constant 0 : index
    %2 = vector.load %arg3[%c8, %c0_2] : memref<56x128xf32, #tpu.memory_space<vmem>>, vector<2x8xf32>
    %c8_3 = arith.constant 8 : index
    %c8_4 = arith.constant 8 : index
    %3 = vector.load %arg3[%c8_3, %c8_4] : memref<56x128xf32, #tpu.memory_space<vmem>>, vector<2x1xf32>
    %c16 = arith.constant 16 : index
    %c0_5 = arith.constant 0 : index
    %4 = vector.load %arg3[%c16, %c0_5] : memref<56x128xf32, #tpu.memory_space<vmem>>, vector<32x8xf32>
    %c16_6 = arith.constant 16 : index
    %c8_7 = arith.constant 8 : index
    %5 = vector.load %arg3[%c16_6, %c8_7] : memref<56x128xf32, #tpu.memory_space<vmem>>, vector<32x1xf32>
    %c48 = arith.constant 48 : index
    %c0_8 = arith.constant 0 : index
    %6 = vector.load %arg3[%c48, %c0_8] : memref<56x128xf32, #tpu.memory_space<vmem>>, vector<2x32xf32>
    %c48_9 = arith.constant 48 : index
    %c32 = arith.constant 32 : index
    %7 = vector.load %arg3[%c48_9, %c32] : memref<56x128xf32, #tpu.memory_space<vmem>>, vector<2x1xf32>
    %c0_10 = arith.constant 0 : index
    %c0_11 = arith.constant 0 : index
    %8 = vector.load %arg0[%c0_10, %c0_11] : memref<27x512xf32, #tpu.memory_space<vmem>>, vector<27x512xf32>
    %cst = arith.constant dense<0.000000e+00> : vector<8x512xf32>
    %9 = tpu.matmul %0, %8, %cst {dimension_numbers = #tpu.dot_dimension_numbers<[1], [0], [0], [1], [0, 0, 1, 1], [], []>} : vector<8x27xf32>, vector<27x512xf32>, vector<8x512xf32> -> vector<8x512xf32>
    %10 = vector.broadcast %1 : vector<8x1xf32> to vector<8x512xf32>
    %11 = arith.addf %9, %10 : vector<8x512xf32>
    %cst_12 = arith.constant 0.000000e+00 : f32
    %12 = vector.broadcast %cst_12 : f32 to vector<8x512xf32>
    %13 = arith.maximumf %11, %12 : vector<8x512xf32>
    %c0_13 = arith.constant 0 : index
    %c0_14 = arith.constant 0 : index
    %14 = vector.load %arg2[%c0_13, %c0_14] : memref<512x2xf32, #tpu.memory_space<vmem>>, vector<512x2xf32>
    %cst_15 = arith.constant dense<0.000000e+00> : vector<8x2xf32>
    %15 = tpu.matmul %13, %14, %cst_15 {dimension_numbers = #tpu.dot_dimension_numbers<[1], [0], [0], [1], [0, 0, 1, 1], [], []>} : vector<8x512xf32>, vector<512x2xf32>, vector<8x2xf32> -> vector<8x2xf32>
    %cst_16 = arith.constant dense<0.000000e+00> : vector<2x2xf32>
    %16 = tpu.matmul %2, %15, %cst_16 {dimension_numbers = #tpu.dot_dimension_numbers<[1], [0], [0], [1], [0, 0, 1, 1], [], []>} : vector<2x8xf32>, vector<8x2xf32>, vector<2x2xf32> -> vector<2x2xf32>
    %17 = vector.broadcast %3 : vector<2x1xf32> to vector<2x2xf32>
    %18 = arith.addf %16, %17 : vector<2x2xf32>
    %c0_17 = arith.constant 0 : index
    %c0_18 = arith.constant 0 : index
    %19 = vector.load %arg1[%c0_17, %c0_18] : memref<8x2xf32, #tpu.memory_space<vmem>>, vector<8x2xf32>
    %cst_19 = arith.constant dense<0.000000e+00> : vector<32x2xf32>
    %20 = tpu.matmul %4, %19, %cst_19 {dimension_numbers = #tpu.dot_dimension_numbers<[1], [0], [0], [1], [0, 0, 1, 1], [], []>} : vector<32x8xf32>, vector<8x2xf32>, vector<32x2xf32> -> vector<32x2xf32>
    %21 = vector.broadcast %5 : vector<32x1xf32> to vector<32x2xf32>
    %22 = arith.addf %20, %21 : vector<32x2xf32>
    %cst_20 = arith.constant 0.000000e+00 : f32
    %23 = vector.broadcast %cst_20 : f32 to vector<32x2xf32>
    %24 = arith.maximumf %22, %23 : vector<32x2xf32>
    %cst_21 = arith.constant dense<0.000000e+00> : vector<2x2xf32>
    %25 = tpu.matmul %6, %24, %cst_21 {dimension_numbers = #tpu.dot_dimension_numbers<[1], [0], [0], [1], [0, 0, 1, 1], [], []>} : vector<2x32xf32>, vector<32x2xf32>, vector<2x2xf32> -> vector<2x2xf32>
    %26 = vector.broadcast %7 : vector<2x1xf32> to vector<2x2xf32>
    %27 = arith.addf %25, %26 : vector<2x2xf32>
    %c0_22 = arith.constant 0 : index
    %28 = memref.load %arg4[%c0_22] : memref<2xf32, #tpu.memory_space<smem>>
    %29 = vector.broadcast %28 : f32 to vector<2x2xf32>
    %30 = arith.mulf %29, %18 : vector<2x2xf32>
    %c1 = arith.constant 1 : index
    %31 = memref.load %arg4[%c1] : memref<2xf32, #tpu.memory_space<smem>>
    %32 = vector.broadcast %31 : f32 to vector<2x2xf32>
    %33 = arith.mulf %32, %27 : vector<2x2xf32>
    %34 = arith.addf %30, %33 : vector<2x2xf32>
    %35 = arith.negf %34 : vector<2x2xf32>
    %36 = math.exp %35 : vector<2x2xf32>
    %cst_23 = arith.constant 1.000000e+00 : f32
    %37 = vector.broadcast %cst_23 : f32 to vector<2x2xf32>
    %38 = arith.addf %37, %36 : vector<2x2xf32>
    %39 = arith.divf %37, %38 : vector<2x2xf32>
    %c0_24 = arith.constant 0 : index
    %c0_25 = arith.constant 0 : index
    %40 = vector.load %arg5[%c0_24, %c0_25] : memref<2x2xf32, #tpu.memory_space<vmem>>, vector<2x2xf32>
    tpu.vector_store %arg5[%c0_24, %c0_25], %39 {strides = array<i32>} : memref<2x2xf32, #tpu.memory_space<vmem>>, vector<2x2xf32>,
    return
  }
}

</mosaic_0001>

<llo_original>
// kernel: combined_model_forward.1
$region0: #{combined_model_forward.1}
  #allocation0 [shape = 'u32[]', space=smem, size = 0x4, offset = 0x4, fixed_abs, tag = 'smem constant byte address 0x4 - core index']
  #allocation1 [shape = 'u32[144,128]{1,0:T(1,128)}', space=vmem, size = 0x12000, scoped, tag = 'internal scratch']
  %s0 = inlined_call_operand.vmem [shape: f32[27,512], index: 0, kind: input, shape index: {}]
  %s1 = inlined_call_operand.vmem [shape: f32[8,2], index: 1, kind: input, shape index: {}]
  %s2 = inlined_call_operand.vmem [shape: f32[512,2], index: 2, kind: input, shape index: {}]
  %s3 = inlined_call_operand.vmem [shape: f32[56,128], index: 3, kind: input, shape index: {}]
  %s4 = inlined_call_operand.vmem [shape: f32[2], index: 4, kind: input, shape index: {}]
  %s5 = inlined_call_operand.vmem [shape: f32[2,2], index: 5, kind: output, shape index: {}]
  %s6 = sld [smem:[#allocation0]]
  $region34: #{combined_model_forward.1} parent=0
    _
  %s8 = ssub.s32 1, %s6
  %s9 = scalar_select 0, %s8, %s6
  $region1: #{combined_model_forward.1} parent=0
    #allocation2 [shape = 'u8[512]{0}', space=smem, size = 0x200, scoped, tag = 'input window, operand 4, single buffered']
    #allocation3 [shape = 's32[1]{0}', space=sflag, size = 0x4, scoped, tag = 'scoped memory for combined_model_forward.1']
    %10 = vsyncpa [#allocation3], 0
    // Predicated region
    $region2: #{combined_model_forward.1} parent=1 // pred_check
      _
    $region3: #{combined_model_forward.1} parent=1 // pred_check_branch
      %12 = sbr.rel (0) target = $region5
    $region4: #{combined_model_forward.1} parent=1 // pred_region
      _
    $region5: #{combined_model_forward.1} parent=1 // pred_fallthru
      _
    // Predicated region
    $region6: #{combined_model_forward.1} parent=1 // pred_check
      _
    $region7: #{combined_model_forward.1} parent=1 // pred_check_branch
      %14 = sbr.rel (0) target = $region9
    $region8: #{combined_model_forward.1} parent=1 // pred_region
      _
    $region9: #{combined_model_forward.1} parent=1 // pred_fallthru
      _
    // Predicated region
    $region10: #{combined_model_forward.1} parent=1 // pred_check
      _
    $region11: #{combined_model_forward.1} parent=1 // pred_check_branch
      %16 = sbr.rel (0) target = $region13
    $region12: #{combined_model_forward.1} parent=1 // pred_region
      _
    $region13: #{combined_model_forward.1} parent=1 // pred_fallthru
      _
    // Predicated region
    $region14: #{combined_model_forward.1} parent=1 // pred_check
      _
    $region15: #{combined_model_forward.1} parent=1 // pred_check_branch
      %18 = sbr.rel (0) target = $region17
    $region16: #{combined_model_forward.1} parent=1 // pred_region
      _
    $region17: #{combined_model_forward.1} parent=1 // pred_fallthru
      _
    // Predicated region
    $region18: #{combined_model_forward.1} parent=1 // pred_check
      _
    $region19: #{combined_model_forward.1} parent=1 // pred_check_branch
      %20 = sbr.rel (0) target = $region21
    $region20: #{combined_model_forward.1} parent=1 // pred_region
      %s22 = ssub.s32 16, 16
      %23 = vsyncadd [#allocation3], %s22
      %s25 = sshll.u32 %s4, 4
      %s26 = int_to_ptr.vmem [resolvable:$true] %s25
      %28 = dma.vmem_to_smem %s26, 16, [#allocation2], [#allocation3]
    $region21: #{combined_model_forward.1} parent=1 // pred_fallthru
      _
    // Predicated region
    $region22: #{combined_model_forward.1} parent=1 // pred_check
      _
    $region23: #{combined_model_forward.1} parent=1 // pred_check_branch
      %30 = sbr.rel (0) target = $region25
    $region24: #{combined_model_forward.1} parent=1 // pred_region
      %31 = dma.done [#allocation3], 16
    $region25: #{combined_model_forward.1} parent=1 // pred_fallthru
      _
    %32 = sfence
    %v33 = vld [vmem:[%s3] sm:$0xff]
    %v34 = vld [vmem:[%s3 + $0x8] sm:$0x3]
    %v35 = vld [vmem:[%s3 + $0x10] sm:$0xff]
    %v36 = vld [vmem:[%s3 + $0x18] sm:$0xff]
    %v37 = vld [vmem:[%s3 + $0x20] sm:$0xff]
    %v38 = vld [vmem:[%s3 + $0x28] sm:$0xff]
    %v39 = vld [vmem:[%s3 + $0x30] sm:$0x3]
    %v40 = vld [vmem:[%s0] sm:$0xff]
    %v41 = vld [vmem:[%s0 + $0x8] sm:$0xff]
    %v42 = vld [vmem:[%s0 + $0x10] sm:$0xff]
    %v43 = vld [vmem:[%s0 + $0x18] sm:$0xff]
    %v44 = vld [vmem:[%s0 + $0x20] sm:$0xff]
    %v45 = vld [vmem:[%s0 + $0x28] sm:$0xff]
    %v46 = vld [vmem:[%s0 + $0x30] sm:$0xff]
    %v47 = vld [vmem:[%s0 + $0x38] sm:$0xff]
    %v48 = vld [vmem:[%s0 + $0x40] sm:$0xff]
    %v49 = vld [vmem:[%s0 + $0x48] sm:$0xff]
    %v50 = vld [vmem:[%s0 + $0x50] sm:$0xff]
    %v51 = vld [vmem:[%s0 + $0x58] sm:$0xff]
    %v52 = vld [vmem:[%s0 + $0x60] sm:$0x7]
    %v53 = vld [vmem:[%s0 + $0x68] sm:$0x7]
    %v54 = vld [vmem:[%s0 + $0x70] sm:$0x7]
    %v55 = vld [vmem:[%s0 + $0x78] sm:$0x7]
    %57 = vset.pattern.permute.xlu0 27
    %58 = vperm.xlu0 %57, %v33
    %v59 = vpop.permute.xlu0 %58
    %vm61 = vcmask 220160
    %v62 = vsel %vm61, %v33, 0
    %vm64 = vcmask 1042432
    %v66 = vsel %vm64, %v52, 0
    %v69 = vsel %vm64, %v53, 0
    %v72 = vsel %vm64, %v54, 0
    %v75 = vsel %vm64, %v55, 0
    %77 = vmatprep.subr.mxu0 %v41
    %78 = vmatpush1.msra.mxu0 %v40
    %79 = vmatprep.subr.mxu0 %v45
    %80 = vmatpush1.msra.mxu0 %v44
    %81 = vmatprep.subr.mxu0 %v49
    %82 = vmatpush1.msra.mxu0 %v48
    %83 = vmatprep.subr.mxu0 %v69
    %84 = vmatpush1.msra.mxu0 %v66
    %85 = vmatprep.subr.mxu0 0.0
    %86 = vmatpush1.msra.mxu0 0.0
    %87 = vmatprep.subr.mxu0 0.0
    %88 = vmatpush1.msra.mxu0 0.0
    %89 = vmatprep.subr.mxu0 0.0
    %90 = vmatpush1.msra.mxu0 0.0
    %91 = vmatprep.subr.mxu0 0.0
    %92 = vmatpush1.msra.mxu0 0.0
    %93 = vmatprep.subr.mxu0 0.0
    %94 = vmatpush1.msra.mxu0 0.0
    %95 = vmatprep.subr.mxu0 0.0
    %96 = vmatpush1.msra.mxu0 0.0
    %97 = vmatprep.subr.mxu0 0.0
    %98 = vmatpush1.msra.mxu0 0.0
    %99 = vmatprep.subr.mxu0 0.0
    %100 = vmatpush1.msra.mxu0 0.0
    %101 = vmatprep.subr.mxu0 0.0
    %102 = vmatpush1.msra.mxu0 0.0
    %103 = vmatprep.subr.mxu0 0.0
    %104 = vmatpush1.msra.mxu0 0.0
    %105 = vmatprep.subr.mxu0 0.0
    %106 = vmatpush1.msra.mxu0 0.0
    %107 = vmatprep.subr.mxu0 0.0
    %108 = vmatpush1.msra.mxu0 0.0
    %109 = vmatprep.subr.mxu0 0.0
    %110 = vmatpush1.msra.mxu0 0.0
    %111 = vmatprep.subr.mxu0 0.0
    %112 = vmatpush1.msra.mxu0 0.0
    %113 = vmatprep.subr.mxu0 0.0
    %114 = vmatpush1.msra.mxu0 0.0
    %115 = vmatprep.subr.mxu0 0.0
    %116 = vmatpush1.msra.mxu0 0.0
    %117 = vmatprep.subr.mxu0 0.0
    %118 = vmatpush1.msra.mxu0 0.0
    %119 = vmatprep.subr.mxu0 0.0
    %120 = vmatpush1.msra.mxu0 0.0
    %121 = vmatprep.subr.mxu0 0.0
    %122 = vmatpush1.msra.mxu0 0.0
    %123 = vmatprep.subr.mxu0 0.0
    %124 = vmatpush1.msra.mxu0 0.0
    %125 = vmatprep.subr.mxu0 0.0
    %126 = vmatpush1.msra.mxu0 0.0
    %127 = vmatprep.subr.mxu0 0.0
    %128 = vmatpush1.msra.mxu0 0.0
    %129 = vmatprep.subr.mxu0 0.0
    %130 = vmatpush1.msra.mxu0 0.0
    %131 = vmatprep.subr.mxu0 0.0
    %132 = vmatpush1.msra.mxu0 0.0
    %133 = vmatprep.subr.mxu0 0.0
    %134 = vmatpush1.msra.mxu0 0.0
    %135 = vmatprep.subr.mxu0 0.0
    %136 = vmatpush1.msra.mxu0 0.0
    %137 = vmatprep.subr.mxu0 0.0
    %138 = vmatpush1.msra.mxu0 0.0
    %139 = vmatprep.subr.mxu0 0.0
    %140 = vmatpush1.msra.mxu0 0.0
    %141 = vmatprep.mubr.f32.mxu0 0.0
    %142 = vmatmul.mubr.f32.gmra.mrb[0].mxu0 %v62
    %v143 = vpop.f32.mrb[0].mxu0
    %v144 = vadd.f32 %v59, %v143
    %v145 = vpop.f32.mrb[0].mxu0
    %v146 = vadd.f32 %v59, %v145
    %147 = vdwg.mxu0
    %148 = vmatprep.subr.mxu0 %v43
    %149 = vmatpush1.msra.mxu0 %v42
    %150 = vmatprep.subr.mxu0 %v47
    %151 = vmatpush1.msra.mxu0 %v46
    %152 = vmatprep.subr.mxu0 %v51
    %153 = vmatpush1.msra.mxu0 %v50
    %154 = vmatprep.subr.mxu0 %v75
    %155 = vmatpush1.msra.mxu0 %v72
    %156 = vmatprep.subr.mxu0 0.0
    %157 = vmatpush1.msra.mxu0 0.0
    %158 = vmatprep.subr.mxu0 0.0
    %159 = vmatpush1.msra.mxu0 0.0
    %160 = vmatprep.subr.mxu0 0.0
    %161 = vmatpush1.msra.mxu0 0.0
    %162 = vmatprep.subr.mxu0 0.0
    %163 = vmatpush1.msra.mxu0 0.0
    %164 = vmatprep.subr.mxu0 0.0
    %165 = vmatpush1.msra.mxu0 0.0
    %166 = vmatprep.subr.mxu0 0.0
    %167 = vmatpush1.msra.mxu0 0.0
    %168 = vmatprep.subr.mxu0 0.0
    %169 = vmatpush1.msra.mxu0 0.0
    %170 = vmatprep.subr.mxu0 0.0
    %171 = vmatpush1.msra.mxu0 0.0
    %172 = vmatprep.subr.mxu0 0.0
    %173 = vmatpush1.msra.mxu0 0.0
    %174 = vmatprep.subr.mxu0 0.0
    %175 = vmatpush1.msra.mxu0 0.0
    %176 = vmatprep.subr.mxu0 0.0
    %177 = vmatpush1.msra.mxu0 0.0
    %178 = vmatprep.subr.mxu0 0.0
    %179 = vmatpush1.msra.mxu0 0.0
    %180 = vmatprep.subr.mxu0 0.0
    %181 = vmatpush1.msra.mxu0 0.0
    %182 = vmatprep.subr.mxu0 0.0
    %183 = vmatpush1.msra.mxu0 0.0
    %184 = vmatprep.subr.mxu0 0.0
    %185 = vmatpush1.msra.mxu0 0.0
    %186 = vmatprep.subr.mxu0 0.0
    %187 = vmatpush1.msra.mxu0 0.0
    %188 = vmatprep.subr.mxu0 0.0
    %189 = vmatpush1.msra.mxu0 0.0
    %190 = vmatprep.subr.mxu0 0.0
    %191 = vmatpush1.msra.mxu0 0.0
    %192 = vmatprep.subr.mxu0 0.0
    %193 = vmatpush1.msra.mxu0 0.0
    %194 = vmatprep.subr.mxu0 0.0
    %195 = vmatpush1.msra.mxu0 0.0
    %196 = vmatprep.subr.mxu0 0.0
    %197 = vmatpush1.msra.mxu0 0.0
    %198 = vmatprep.subr.mxu0 0.0
    %199 = vmatpush1.msra.mxu0 0.0
    %200 = vmatprep.subr.mxu0 0.0
    %201 = vmatpush1.msra.mxu0 0.0
    %202 = vmatprep.subr.mxu0 0.0
    %203 = vmatpush1.msra.mxu0 0.0
    %204 = vmatprep.subr.mxu0 0.0
    %205 = vmatpush1.msra.mxu0 0.0
    %206 = vmatprep.subr.mxu0 0.0
    %207 = vmatpush1.msra.mxu0 0.0
    %208 = vmatprep.subr.mxu0 0.0
    %209 = vmatpush1.msra.mxu0 0.0
    %210 = vmatprep.subr.mxu0 0.0
    %211 = vmatpush1.msra.mxu0 0.0
    %212 = vmatprep.mubr.f32.mxu0 0.0
    %213 = vmatmul.mubr.f32.gmra.mrb[0].mxu0 %v62
    %v214 = vpop.f32.mrb[0].mxu0
    %v215 = vadd.f32 %v59, %v214
    %v216 = vpop.f32.mrb[0].mxu0
    %v217 = vadd.f32 %v59, %v216
    %218 = vdwg.mxu0
    %v219 = vmax.f32 %v144, 0.0
    %v220 = vmax.f32 %v146, 0.0
    %v221 = vmax.f32 %v215, 0.0
    %v222 = vmax.f32 %v217, 0.0
    %v223 = vld [vmem:[%s2] sm:$0xff]
    %v224 = vld [vmem:[%s2 + $0x8] sm:$0xff]
    %v225 = vld [vmem:[%s2 + $0x10] sm:$0xff]
    %v226 = vld [vmem:[%s2 + $0x18] sm:$0xff]
    %v227 = vld [vmem:[%s2 + $0x20] sm:$0xff]
    %v228 = vld [vmem:[%s2 + $0x28] sm:$0xff]
    %v229 = vld [vmem:[%s2 + $0x30] sm:$0xff]
    %v230 = vld [vmem:[%s2 + $0x38] sm:$0xff]
    %v231 = vld [vmem:[%s2 + $0x40] sm:$0xff]
    %v232 = vld [vmem:[%s2 + $0x48] sm:$0xff]
    %v233 = vld [vmem:[%s2 + $0x50] sm:$0xff]
    %v234 = vld [vmem:[%s2 + $0x58] sm:$0xff]
    %v235 = vld [vmem:[%s2 + $0x60] sm:$0xff]
    %v236 = vld [vmem:[%s2 + $0x68] sm:$0xff]
    %v237 = vld [vmem:[%s2 + $0x70] sm:$0xff]
    %v238 = vld [vmem:[%s2 + $0x78] sm:$0xff]
    %v239 = vld [vmem:[%s2 + $0x80] sm:$0xff]
    %v240 = vld [vmem:[%s2 + $0x88] sm:$0xff]
    %v241 = vld [vmem:[%s2 + $0x90] sm:$0xff]
    %v242 = vld [vmem:[%s2 + $0x98] sm:$0xff]
    %v243 = vld [vmem:[%s2 + $0xa0] sm:$0xff]
    %v244 = vld [vmem:[%s2 + $0xa8] sm:$0xff]
    %v245 = vld [vmem:[%s2 + $0xb0] sm:$0xff]
    %v246 = vld [vmem:[%s2 + $0xb8] sm:$0xff]
    %v247 = vld [vmem:[%s2 + $0xc0] sm:$0xff]
    %v248 = vld [vmem:[%s2 + $0xc8] sm:$0xff]
    %v249 = vld [vmem:[%s2 + $0xd0] sm:$0xff]
    %v250 = vld [vmem:[%s2 + $0xd8] sm:$0xff]
    %v251 = vld [vmem:[%s2 + $0xe0] sm:$0xff]
    %v252 = vld [vmem:[%s2 + $0xe8] sm:$0xff]
    %v253 = vld [vmem:[%s2 + $0xf0] sm:$0xff]
    %v254 = vld [vmem:[%s2 + $0xf8] sm:$0xff]
    %v255 = vld [vmem:[%s2 + $0x100] sm:$0xff]
    %v256 = vld [vmem:[%s2 + $0x108] sm:$0xff]
    %v257 = vld [vmem:[%s2 + $0x110] sm:$0xff]
    %v258 = vld [vmem:[%s2 + $0x118] sm:$0xff]
    %v259 = vld [vmem:[%s2 + $0x120] sm:$0xff]
    %v260 = vld [vmem:[%s2 + $0x128] sm:$0xff]
    %v261 = vld [vmem:[%s2 + $0x130] sm:$0xff]
    %v262 = vld [vmem:[%s2 + $0x138] sm:$0xff]
    %v263 = vld [vmem:[%s2 + $0x140] sm:$0xff]
    %v264 = vld [vmem:[%s2 + $0x148] sm:$0xff]
    %v265 = vld [vmem:[%s2 + $0x150] sm:$0xff]
    %v266 = vld [vmem:[%s2 + $0x158] sm:$0xff]
    %v267 = vld [vmem:[%s2 + $0x160] sm:$0xff]
    %v268 = vld [vmem:[%s2 + $0x168] sm:$0xff]
    %v269 = vld [vmem:[%s2 + $0x170] sm:$0xff]
    %v270 = vld [vmem:[%s2 + $0x178] sm:$0xff]
    %v271 = vld [vmem:[%s2 + $0x180] sm:$0xff]
    %v272 = vld [vmem:[%s2 + $0x188] sm:$0xff]
    %v273 = vld [vmem:[%s2 + $0x190] sm:$0xff]
    %v274 = vld [vmem:[%s2 + $0x198] sm:$0xff]
    %v275 = vld [vmem:[%s2 + $0x1a0] sm:$0xff]
    %v276 = vld [vmem:[%s2 + $0x1a8] sm:$0xff]
    %v277 = vld [vmem:[%s2 + $0x1b0] sm:$0xff]
    %v278 = vld [vmem:[%s2 + $0x1b8] sm:$0xff]
    %v279 = vld [vmem:[%s2 + $0x1c0] sm:$0xff]
    %v280 = vld [vmem:[%s2 + $0x1c8] sm:$0xff]
    %v281 = vld [vmem:[%s2 + $0x1d0] sm:$0xff]
    %v282 = vld [vmem:[%s2 + $0x1d8] sm:$0xff]
    %v283 = vld [vmem:[%s2 + $0x1e0] sm:$0xff]
    %v284 = vld [vmem:[%s2 + $0x1e8] sm:$0xff]
    %v285 = vld [vmem:[%s2 + $0x1f0] sm:$0xff]
    %v286 = vld [vmem:[%s2 + $0x1f8] sm:$0xff]
    %287 = vmatprep.subr.mxu0 0.0
    %288 = vmatpush1.msra.mxu0 %v223
    %289 = vmatprep.subr.mxu0 0.0
    %290 = vmatpush1.msra.mxu0 %v224
    %291 = vmatprep.subr.mxu0 0.0
    %292 = vmatpush1.msra.mxu0 %v225
    %293 = vmatprep.subr.mxu0 0.0
    %294 = vmatpush1.msra.mxu0 %v226
    %295 = vmatprep.subr.mxu0 0.0
    %296 = vmatpush1.msra.mxu0 %v227
    %297 = vmatprep.subr.mxu0 0.0
    %298 = vmatpush1.msra.mxu0 %v228
    %299 = vmatprep.subr.mxu0 0.0
    %300 = vmatpush1.msra.mxu0 %v229
    %301 = vmatprep.subr.mxu0 0.0
    %302 = vmatpush1.msra.mxu0 %v230
    %303 = vmatprep.subr.mxu0 0.0
    %304 = vmatpush1.msra.mxu0 %v231
    %305 = vmatprep.subr.mxu0 0.0
    %306 = vmatpush1.msra.mxu0 %v232
    %307 = vmatprep.subr.mxu0 0.0
    %308 = vmatpush1.msra.mxu0 %v233
    %309 = vmatprep.subr.mxu0 0.0
    %310 = vmatpush1.msra.mxu0 %v234
    %311 = vmatprep.subr.mxu0 0.0
    %312 = vmatpush1.msra.mxu0 %v235
    %313 = vmatprep.subr.mxu0 0.0
    %314 = vmatpush1.msra.mxu0 %v236
    %315 = vmatprep.subr.mxu0 0.0
    %316 = vmatpush1.msra.mxu0 %v237
    %317 = vmatprep.subr.mxu0 0.0
    %318 = vmatpush1.msra.mxu0 %v238
    %319 = vmatprep.subr.mxu0 0.0
    %320 = vmatpush1.msra.mxu0 %v239
    %321 = vmatprep.subr.mxu0 0.0
    %322 = vmatpush1.msra.mxu0 %v240
    %323 = vmatprep.subr.mxu0 0.0
    %324 = vmatpush1.msra.mxu0 %v241
    %325 = vmatprep.subr.mxu0 0.0
    %326 = vmatpush1.msra.mxu0 %v242
    %327 = vmatprep.subr.mxu0 0.0
    %328 = vmatpush1.msra.mxu0 %v243
    %329 = vmatprep.subr.mxu0 0.0
    %330 = vmatpush1.msra.mxu0 %v244
    %331 = vmatprep.subr.mxu0 0.0
    %332 = vmatpush1.msra.mxu0 %v245
    %333 = vmatprep.subr.mxu0 0.0
    %334 = vmatpush1.msra.mxu0 %v246
    %335 = vmatprep.subr.mxu0 0.0
    %336 = vmatpush1.msra.mxu0 %v247
    %337 = vmatprep.subr.mxu0 0.0
    %338 = vmatpush1.msra.mxu0 %v248
    %339 = vmatprep.subr.mxu0 0.0
    %340 = vmatpush1.msra.mxu0 %v249
    %341 = vmatprep.subr.mxu0 0.0
    %342 = vmatpush1.msra.mxu0 %v250
    %343 = vmatprep.subr.mxu0 0.0
    %344 = vmatpush1.msra.mxu0 %v251
    %345 = vmatprep.subr.mxu0 0.0
    %346 = vmatpush1.msra.mxu0 %v252
    %347 = vmatprep.subr.mxu0 0.0
    %348 = vmatpush1.msra.mxu0 %v253
    %349 = vmatprep.subr.mxu0 0.0
    %350 = vmatpush1.msra.mxu0 %v254
    %351 = vmatprep.mubr.f32.mxu0 %v220
    %352 = vmatmul.mubr.f32.gmra.mrb[0].mxu0 %v219
    %v353 = vpop.f32.mrb[0].mxu0
    %v354 = vadd.f32 0.0, %v353
    %v355 = vpop.f32.mrb[0].mxu0
    %356 = vdwg.mxu0
    %357 = vmatprep.subr.mxu0 0.0
    %358 = vmatpush1.msra.mxu0 %v255
    %359 = vmatprep.subr.mxu0 0.0
    %360 = vmatpush1.msra.mxu0 %v256
    %361 = vmatprep.subr.mxu0 0.0
    %362 = vmatpush1.msra.mxu0 %v257
    %363 = vmatprep.subr.mxu0 0.0
    %364 = vmatpush1.msra.mxu0 %v258
    %365 = vmatprep.subr.mxu0 0.0
    %366 = vmatpush1.msra.mxu0 %v259
    %367 = vmatprep.subr.mxu0 0.0
    %368 = vmatpush1.msra.mxu0 %v260
    %369 = vmatprep.subr.mxu0 0.0
    %370 = vmatpush1.msra.mxu0 %v261
    %371 = vmatprep.subr.mxu0 0.0
    %372 = vmatpush1.msra.mxu0 %v262
    %373 = vmatprep.subr.mxu0 0.0
    %374 = vmatpush1.msra.mxu0 %v263
    %375 = vmatprep.subr.mxu0 0.0
    %376 = vmatpush1.msra.mxu0 %v264
    %377 = vmatprep.subr.mxu0 0.0
    %378 = vmatpush1.msra.mxu0 %v265
    %379 = vmatprep.subr.mxu0 0.0
    %380 = vmatpush1.msra.mxu0 %v266
    %381 = vmatprep.subr.mxu0 0.0
    %382 = vmatpush1.msra.mxu0 %v267
    %383 = vmatprep.subr.mxu0 0.0
    %384 = vmatpush1.msra.mxu0 %v268
    %385 = vmatprep.subr.mxu0 0.0
    %386 = vmatpush1.msra.mxu0 %v269
    %387 = vmatprep.subr.mxu0 0.0
    %388 = vmatpush1.msra.mxu0 %v270
    %389 = vmatprep.subr.mxu0 0.0
    %390 = vmatpush1.msra.mxu0 %v271
    %391 = vmatprep.subr.mxu0 0.0
    %392 = vmatpush1.msra.mxu0 %v272
    %393 = vmatprep.subr.mxu0 0.0
    %394 = vmatpush1.msra.mxu0 %v273
    %395 = vmatprep.subr.mxu0 0.0
    %396 = vmatpush1.msra.mxu0 %v274
    %397 = vmatprep.subr.mxu0 0.0
    %398 = vmatpush1.msra.mxu0 %v275
    %399 = vmatprep.subr.mxu0 0.0
    %400 = vmatpush1.msra.mxu0 %v276
    %401 = vmatprep.subr.mxu0 0.0
    %402 = vmatpush1.msra.mxu0 %v277
    %403 = vmatprep.subr.mxu0 0.0
    %404 = vmatpush1.msra.mxu0 %v278
    %405 = vmatprep.subr.mxu0 0.0
    %406 = vmatpush1.msra.mxu0 %v279
    %407 = vmatprep.subr.mxu0 0.0
    %408 = vmatpush1.msra.mxu0 %v280
    %409 = vmatprep.subr.mxu0 0.0
    %410 = vmatpush1.msra.mxu0 %v281
    %411 = vmatprep.subr.mxu0 0.0
    %412 = vmatpush1.msra.mxu0 %v282
    %413 = vmatprep.subr.mxu0 0.0
    %414 = vmatpush1.msra.mxu0 %v283
    %415 = vmatprep.subr.mxu0 0.0
    %416 = vmatpush1.msra.mxu0 %v284
    %417 = vmatprep.subr.mxu0 0.0
    %418 = vmatpush1.msra.mxu0 %v285
    %419 = vmatprep.subr.mxu0 0.0
    %420 = vmatpush1.msra.mxu0 %v286
    %421 = vmatprep.mubr.f32.mxu0 %v222
    %422 = vmatmul.mubr.f32.gmra.mrb[0].mxu0 %v221
    %v423 = vpop.f32.mrb[0].mxu0
    %v424 = vadd.f32 %v354, %v423
    %v425 = vpop.f32.mrb[0].mxu0
    %426 = vdwg.mxu0
    %428 = vset.pattern.permute.xlu0 8
    %429 = vperm.xlu0 %428, %v34
    %v430 = vpop.permute.xlu0 %429
    %vm432 = vcmask 64512
    %v433 = vsel %vm432, %v34, 0
    %435 = vmatprep.subr.mxu0 0.0
    %436 = vmatpush1.msra.mxu0 %v424
    %437 = vmatprep.subr.mxu0 0.0
    %438 = vmatpush1.msra.mxu0 0.0
    %439 = vmatprep.subr.mxu0 0.0
    %440 = vmatpush1.msra.mxu0 0.0
    %441 = vmatprep.subr.mxu0 0.0
    %442 = vmatpush1.msra.mxu0 0.0
    %443 = vmatprep.subr.mxu0 0.0
    %444 = vmatpush1.msra.mxu0 0.0
    %445 = vmatprep.subr.mxu0 0.0
    %446 = vmatpush1.msra.mxu0 0.0
    %447 = vmatprep.subr.mxu0 0.0
    %448 = vmatpush1.msra.mxu0 0.0
    %449 = vmatprep.subr.mxu0 0.0
    %450 = vmatpush1.msra.mxu0 0.0
    %451 = vmatprep.subr.mxu0 0.0
    %452 = vmatpush1.msra.mxu0 0.0
    %453 = vmatprep.subr.mxu0 0.0
    %454 = vmatpush1.msra.mxu0 0.0
    %455 = vmatprep.subr.mxu0 0.0
    %456 = vmatpush1.msra.mxu0 0.0
    %457 = vmatprep.subr.mxu0 0.0
    %458 = vmatpush1.msra.mxu0 0.0
    %459 = vmatprep.subr.mxu0 0.0
    %460 = vmatpush1.msra.mxu0 0.0
    %461 = vmatprep.subr.mxu0 0.0
    %462 = vmatpush1.msra.mxu0 0.0
    %463 = vmatprep.subr.mxu0 0.0
    %464 = vmatpush1.msra.mxu0 0.0
    %465 = vmatprep.subr.mxu0 0.0
    %466 = vmatpush1.msra.mxu0 0.0
    %467 = vmatprep.subr.mxu0 0.0
    %468 = vmatpush1.msra.mxu0 0.0
    %469 = vmatprep.subr.mxu0 0.0
    %470 = vmatpush1.msra.mxu0 0.0
    %471 = vmatprep.subr.mxu0 0.0
    %472 = vmatpush1.msra.mxu0 0.0
    %473 = vmatprep.subr.mxu0 0.0
    %474 = vmatpush1.msra.mxu0 0.0
    %475 = vmatprep.subr.mxu0 0.0
    %476 = vmatpush1.msra.mxu0 0.0
    %477 = vmatprep.subr.mxu0 0.0
    %478 = vmatpush1.msra.mxu0 0.0
    %479 = vmatprep.subr.mxu0 0.0
    %480 = vmatpush1.msra.mxu0 0.0
    %481 = vmatprep.subr.mxu0 0.0
    %482 = vmatpush1.msra.mxu0 0.0
    %483 = vmatprep.subr.mxu0 0.0
    %484 = vmatpush1.msra.mxu0 0.0
    %485 = vmatprep.subr.mxu0 0.0
    %486 = vmatpush1.msra.mxu0 0.0
    %487 = vmatprep.subr.mxu0 0.0
    %488 = vmatpush1.msra.mxu0 0.0
    %489 = vmatprep.subr.mxu0 0.0
    %490 = vmatpush1.msra.mxu0 0.0
    %491 = vmatprep.subr.mxu0 0.0
    %492 = vmatpush1.msra.mxu0 0.0
    %493 = vmatprep.subr.mxu0 0.0
    %494 = vmatpush1.msra.mxu0 0.0
    %495 = vmatprep.subr.mxu0 0.0
    %496 = vmatpush1.msra.mxu0 0.0
    %497 = vmatprep.subr.mxu0 0.0
    %498 = vmatpush1.msra.mxu0 0.0
    %499 = vmatprep.mubr.f32.mxu0 0.0
    %500 = vmatmul.mubr.f32.gmra.mrb[0].mxu0 %v433
    %v501 = vpop.f32.mrb[0].mxu0
    %v502 = vadd.f32 %v430, %v501
    %v503 = vpop.f32.mrb[0].mxu0
    %504 = vdwg.mxu0
    %v505 = vld [vmem:[%s1] sm:$0xff]
    %507 = vset.pattern.permute.xlu0 8
    %508 = vperm.xlu0 %507, %v35
    %v509 = vpop.permute.xlu0 %508
    %512 = vset.pattern.permute.xlu0 8
    %513 = vperm.xlu0 %512, %v36
    %v514 = vpop.permute.xlu0 %513
    %517 = vset.pattern.permute.xlu0 8
    %518 = vperm.xlu0 %517, %v37
    %v519 = vpop.permute.xlu0 %518
    %522 = vset.pattern.permute.xlu0 8
    %523 = vperm.xlu0 %522, %v38
    %v524 = vpop.permute.xlu0 %523
    %v526 = vsel %vm432, %v35, 0
    %v528 = vsel %vm432, %v36, 0
    %v530 = vsel %vm432, %v37, 0
    %v532 = vsel %vm432, %v38, 0
    %534 = vmatprep.subr.mxu0 0.0
    %535 = vmatpush1.msra.mxu0 %v505
    %536 = vmatprep.subr.mxu0 0.0
    %537 = vmatpush1.msra.mxu0 0.0
    %538 = vmatprep.subr.mxu0 0.0
    %539 = vmatpush1.msra.mxu0 0.0
    %540 = vmatprep.subr.mxu0 0.0
    %541 = vmatpush1.msra.mxu0 0.0
    %542 = vmatprep.subr.mxu0 0.0
    %543 = vmatpush1.msra.mxu0 0.0
    %544 = vmatprep.subr.mxu0 0.0
    %545 = vmatpush1.msra.mxu0 0.0
    %546 = vmatprep.subr.mxu0 0.0
    %547 = vmatpush1.msra.mxu0 0.0
    %548 = vmatprep.subr.mxu0 0.0
    %549 = vmatpush1.msra.mxu0 0.0
    %550 = vmatprep.subr.mxu0 0.0
    %551 = vmatpush1.msra.mxu0 0.0
    %552 = vmatprep.subr.mxu0 0.0
    %553 = vmatpush1.msra.mxu0 0.0
    %554 = vmatprep.subr.mxu0 0.0
    %555 = vmatpush1.msra.mxu0 0.0
    %556 = vmatprep.subr.mxu0 0.0
    %557 = vmatpush1.msra.mxu0 0.0
    %558 = vmatprep.subr.mxu0 0.0
    %559 = vmatpush1.msra.mxu0 0.0
    %560 = vmatprep.subr.mxu0 0.0
    %561 = vmatpush1.msra.mxu0 0.0
    %562 = vmatprep.subr.mxu0 0.0
    %563 = vmatpush1.msra.mxu0 0.0
    %564 = vmatprep.subr.mxu0 0.0
    %565 = vmatpush1.msra.mxu0 0.0
    %566 = vmatprep.subr.mxu0 0.0
    %567 = vmatpush1.msra.mxu0 0.0
    %568 = vmatprep.subr.mxu0 0.0
    %569 = vmatpush1.msra.mxu0 0.0
    %570 = vmatprep.subr.mxu0 0.0
    %571 = vmatpush1.msra.mxu0 0.0
    %572 = vmatprep.subr.mxu0 0.0
    %573 = vmatpush1.msra.mxu0 0.0
    %574 = vmatprep.subr.mxu0 0.0
    %575 = vmatpush1.msra.mxu0 0.0
    %576 = vmatprep.subr.mxu0 0.0
    %577 = vmatpush1.msra.mxu0 0.0
    %578 = vmatprep.subr.mxu0 0.0
    %579 = vmatpush1.msra.mxu0 0.0
    %580 = vmatprep.subr.mxu0 0.0
    %581 = vmatpush1.msra.mxu0 0.0
    %582 = vmatprep.subr.mxu0 0.0
    %583 = vmatpush1.msra.mxu0 0.0
    %584 = vmatprep.subr.mxu0 0.0
    %585 = vmatpush1.msra.mxu0 0.0
    %586 = vmatprep.subr.mxu0 0.0
    %587 = vmatpush1.msra.mxu0 0.0
    %588 = vmatprep.subr.mxu0 0.0
    %589 = vmatpush1.msra.mxu0 0.0
    %590 = vmatprep.subr.mxu0 0.0
    %591 = vmatpush1.msra.mxu0 0.0
    %592 = vmatprep.subr.mxu0 0.0
    %593 = vmatpush1.msra.mxu0 0.0
    %594 = vmatprep.subr.mxu0 0.0
    %595 = vmatpush1.msra.mxu0 0.0
    %596 = vmatprep.subr.mxu0 0.0
    %597 = vmatpush1.msra.mxu0 0.0
    %598 = vmatprep.mubr.f32.mxu0 0.0
    %599 = vmatmul.mubr.f32.gmra.mrb[0].mxu0 %v526
    %v600 = vpop.f32.mrb[0].mxu0
    %v601 = vadd.f32 %v509, %v600
    %v602 = vpop.f32.mrb[0].mxu0
    %603 = vmatprep.mubr.f32.mxu0 0.0
    %604 = vmatmul.mubr.f32.gmra.mrb[0].mxu0 %v528
    %v605 = vpop.f32.mrb[0].mxu0
    %v606 = vadd.f32 %v514, %v605
    %v607 = vpop.f32.mrb[0].mxu0
    %608 = vmatprep.mubr.f32.mxu0 0.0
    %609 = vmatmul.mubr.f32.gmra.mrb[0].mxu0 %v530
    %v610 = vpop.f32.mrb[0].mxu0
    %v611 = vadd.f32 %v519, %v610
    %v612 = vpop.f32.mrb[0].mxu0
    %613 = vmatprep.mubr.f32.mxu0 0.0
    %614 = vmatmul.mubr.f32.gmra.mrb[0].mxu0 %v532
    %v615 = vpop.f32.mrb[0].mxu0
    %v616 = vadd.f32 %v524, %v615
    %v617 = vpop.f32.mrb[0].mxu0
    %618 = vdwg.mxu0
    %v619 = vmax.f32 %v601, 0.0
    %v620 = vmax.f32 %v606, 0.0
    %v621 = vmax.f32 %v611, 0.0
    %v622 = vmax.f32 %v616, 0.0
    %624 = vset.pattern.permute.xlu0 32
    %625 = vperm.xlu0 %624, %v39
    %v626 = vpop.permute.xlu0 %625
    %vm628 = vcmask 261120
    %v629 = vsel %vm628, %v39, 0
    %631 = vmatprep.subr.mxu0 0.0
    %632 = vmatpush1.msra.mxu0 %v619
    %633 = vmatprep.subr.mxu0 0.0
    %634 = vmatpush1.msra.mxu0 %v620
    %635 = vmatprep.subr.mxu0 0.0
    %636 = vmatpush1.msra.mxu0 %v621
    %637 = vmatprep.subr.mxu0 0.0
    %638 = vmatpush1.msra.mxu0 %v622
    %639 = vmatprep.subr.mxu0 0.0
    %640 = vmatpush1.msra.mxu0 0.0
    %641 = vmatprep.subr.mxu0 0.0
    %642 = vmatpush1.msra.mxu0 0.0
    %643 = vmatprep.subr.mxu0 0.0
    %644 = vmatpush1.msra.mxu0 0.0
    %645 = vmatprep.subr.mxu0 0.0
    %646 = vmatpush1.msra.mxu0 0.0
    %647 = vmatprep.subr.mxu0 0.0
    %648 = vmatpush1.msra.mxu0 0.0
    %649 = vmatprep.subr.mxu0 0.0
    %650 = vmatpush1.msra.mxu0 0.0
    %651 = vmatprep.subr.mxu0 0.0
    %652 = vmatpush1.msra.mxu0 0.0
    %653 = vmatprep.subr.mxu0 0.0
    %654 = vmatpush1.msra.mxu0 0.0
    %655 = vmatprep.subr.mxu0 0.0
    %656 = vmatpush1.msra.mxu0 0.0
    %657 = vmatprep.subr.mxu0 0.0
    %658 = vmatpush1.msra.mxu0 0.0
    %659 = vmatprep.subr.mxu0 0.0
    %660 = vmatpush1.msra.mxu0 0.0
    %661 = vmatprep.subr.mxu0 0.0
    %662 = vmatpush1.msra.mxu0 0.0
    %663 = vmatprep.subr.mxu0 0.0
    %664 = vmatpush1.msra.mxu0 0.0
    %665 = vmatprep.subr.mxu0 0.0
    %666 = vmatpush1.msra.mxu0 0.0
    %667 = vmatprep.subr.mxu0 0.0
    %668 = vmatpush1.msra.mxu0 0.0
    %669 = vmatprep.subr.mxu0 0.0
    %670 = vmatpush1.msra.mxu0 0.0
    %671 = vmatprep.subr.mxu0 0.0
    %672 = vmatpush1.msra.mxu0 0.0
    %673 = vmatprep.subr.mxu0 0.0
    %674 = vmatpush1.msra.mxu0 0.0
    %675 = vmatprep.subr.mxu0 0.0
    %676 = vmatpush1.msra.mxu0 0.0
    %677 = vmatprep.subr.mxu0 0.0
    %678 = vmatpush1.msra.mxu0 0.0
    %679 = vmatprep.subr.mxu0 0.0
    %680 = vmatpush1.msra.mxu0 0.0
    %681 = vmatprep.subr.mxu0 0.0
    %682 = vmatpush1.msra.mxu0 0.0
    %683 = vmatprep.subr.mxu0 0.0
    %684 = vmatpush1.msra.mxu0 0.0
    %685 = vmatprep.subr.mxu0 0.0
    %686 = vmatpush1.msra.mxu0 0.0
    %687 = vmatprep.subr.mxu0 0.0
    %688 = vmatpush1.msra.mxu0 0.0
    %689 = vmatprep.subr.mxu0 0.0
    %690 = vmatpush1.msra.mxu0 0.0
    %691 = vmatprep.subr.mxu0 0.0
    %692 = vmatpush1.msra.mxu0 0.0
    %693 = vmatprep.subr.mxu0 0.0
    %694 = vmatpush1.msra.mxu0 0.0
    %695 = vmatprep.mubr.f32.mxu0 0.0
    %696 = vmatmul.mubr.f32.gmra.mrb[0].mxu0 %v629
    %v697 = vpop.f32.mrb[0].mxu0
    %v698 = vadd.f32 %v626, %v697
    %v699 = vpop.f32.mrb[0].mxu0
    %700 = vdwg.mxu0
    %s701 = sld [smem:[#allocation2]]
    %v702 = vstv %s701
    %v703 = vmul.f32 %v702, %v502
    %s704 = sld [smem:[#allocation2 + $0x1]]
    %v705 = vstv %s704
    %v706 = vmul.f32 %v705, %v698
    %v707 = vadd.f32 %v703, %v706
    %v708 = vxor.u32 %v707, 2147483648
    %v709 = vmul.f32 %v708, 1.442695
    %v710 = vpow.pop %v709
    %v711 = vadd.f32 %v710, 1.0
    %v712 = vrcp.pop %v711
    %v713 = vmul.f32 1.0, %v712
    %vm714 = vcmask 9216
    %715 = vst.msk [vmem:[%s5] sm:$0x3] %vm714, %v713
    // Predicated region
    $region26: #{combined_model_forward.1} parent=1 // pred_check
      _
    $region27: #{combined_model_forward.1} parent=1 // pred_check_branch
      %717 = sbr.rel (0) target = $region29
    $region28: #{combined_model_forward.1} parent=1 // pred_region
      _
    $region29: #{combined_model_forward.1} parent=1 // pred_fallthru
      _
    // Predicated region
    $region30: #{combined_model_forward.1} parent=1 // pred_check
      _
    $region31: #{combined_model_forward.1} parent=1 // pred_check_branch
      %719 = sbr.rel (0) target = $region33
    $region32: #{combined_model_forward.1} parent=1 // pred_region
      _
    $region33: #{combined_model_forward.1} parent=1 // pred_fallthru
      _
    %720 = vsyncpa [#allocation3], 1

</llo_original>
